<compile_context>
chip_gen: v7x
topology: tpu7x:2x2x1
jax: 0.10.0
libtpu: 0.0.40
codegen_flags: <defaults>
</compile_context>

<pallas_src>
import math

import jax
import jax.numpy as jnp
from jax.experimental import pallas as pl
from jax.experimental.pallas import tpu as pltpu


def _pos_embed_kernel(x_ref, emb_ref, o_ref):
    # Promotion/cast is done here (rides in the VPU slot, which has huge slack);
    # .astype is a no-op when dtypes already match.
    o_ref[...] = x_ref[...].astype(o_ref.dtype) + emb_ref[...].astype(o_ref.dtype)


def _budgets():
    """(per-array tile byte target, vmem_limit_bytes), generation aware."""
    try:
        vmem_cap = int(pltpu.get_tpu_info().vmem_capacity_bytes)
    except Exception:
        vmem_cap = 64 * 1024 * 1024  # conservative fallback (v7x-sized VMEM)
    # ~4 MiB tiles on v7x (64 MiB VMEM), ~6 MiB on v5e/v6e (128 MiB): big enough
    # that the ~0.35 us per-grid-step cost is <7% of a step, small enough that
    # 3 arrays x 2 pipeline buffers fit with headroom.
    tile_target = max(2 << 20, min(6 << 20, vmem_cap // 16))
    vmem_limit = int(min(vmem_cap - (8 << 20), max(8 * tile_target, 32 << 20)))
    return tile_target, vmem_limit


def _sublane_multiple(min_itemsize):
    # Sub-32-bit dtypes pack along sublanes: 4-byte -> 8 rows, 2-byte -> 16, 1-byte -> 32.
    return 8 * max(1, 4 // int(min_itemsize))


def _choose_row_tile(n_rows, row_elems, itemsize, sub, target_bytes):
    """Full extent, or the largest sublane-aligned tile of ~target_bytes."""
    if n_rows * row_elems * itemsize <= target_bytes:
        return int(n_rows)
    t = (target_bytes // (row_elems * itemsize)) // sub * sub
    return int(max(sub, min(n_rows, t)))


def _maybe_split_rows(tile_rows, n_rows, batch, row_bytes, sub):
    """When batch == 1 and the input is non-trivial, guarantee >=2 row tiles so
    both v7x TensorCores get work (extra grid step costs ~0.35 us)."""
    big_enough = n_rows * row_bytes >= (1 << 20)
    if batch == 1 and tile_rows >= n_rows and n_rows >= 2 * sub and big_enough:
        half = ((n_rows // 2 + sub - 1) // sub) * sub
        return int(max(sub, min(tile_rows, half)))
    return tile_rows


def _pos_embed_call_3d(x3, emb2, tile_rows, out_dtype, vmem_limit):
    """x3: (B, N, L); emb2: (>=N or ==tileable, L). Computes x3 + emb2[:N][None]."""
    B, N, L = x3.shape
    n_tiles = pl.cdiv(N, tile_rows)
    bytes_accessed = (
        B * N * L * (jnp.dtype(x3.dtype).itemsize + jnp.dtype(out_dtype).itemsize)
        + N * L * jnp.dtype(emb2.dtype).itemsize
    )
    cost = pl.CostEstimate(flops=B * N * L, transcendentals=0,
                           bytes_accessed=int(bytes_accessed))
    return pl.pallas_call(
        _pos_embed_kernel,
        out_shape=jax.ShapeDtypeStruct((B, N, L), out_dtype),
        grid_spec=pltpu.PrefetchScalarGridSpec(
            num_scalar_prefetch=0,
            # Batch is the inner axis: the emb block index is constant across it,
            # so its tile is DMA'd once per row tile (~N*L bytes total, not B*N*L).
            grid=(n_tiles, B),
            in_specs=[
                pl.BlockSpec((None, tile_rows, L), lambda t, b: (b, t, 0)),
                pl.BlockSpec((tile_rows, L), lambda t, b: (t, 0)),
            ],
            out_specs=pl.BlockSpec((None, tile_rows, L), lambda t, b: (b, t, 0)),
        ),
        compiler_params=pltpu.CompilerParams(
            dimension_semantics=("parallel", "parallel"),
            vmem_limit_bytes=vmem_limit,
        ),
        cost_estimate=cost,
    )(x3, emb2)


def _pos_embed_call_2d(x2, emb2, tile_rows, out_dtype, vmem_limit):
    """Batch-folded repack path. x2: (B*R, L); emb2: (tile_rows, L) = the position
    pattern replicated to exactly one x tile, so its block index is constant."""
    Rtot, L = x2.shape
    n_tiles = pl.cdiv(Rtot, tile_rows)
    bytes_accessed = (
        Rtot * L * (jnp.dtype(x2.dtype).itemsize + jnp.dtype(out_dtype).itemsize)
        + tile_rows * L * jnp.dtype(emb2.dtype).itemsize
    )
    cost = pl.CostEstimate(flops=Rtot * L, transcendentals=0,
                           bytes_accessed=int(bytes_accessed))
    return pl.pallas_call(
        _pos_embed_kernel,
        out_shape=jax.ShapeDtypeStruct((Rtot, L), out_dtype),
        grid_spec=pltpu.PrefetchScalarGridSpec(
            num_scalar_prefetch=0,
            grid=(n_tiles,),
            in_specs=[
                pl.BlockSpec((tile_rows, L), lambda i: (i, 0)),
                pl.BlockSpec((tile_rows, L), lambda i: (0, 0)),
            ],
            out_specs=pl.BlockSpec((tile_rows, L), lambda i: (i, 0)),
        ),
        compiler_params=pltpu.CompilerParams(
            dimension_semantics=("parallel",),
            vmem_limit_bytes=vmem_limit,
        ),
        cost_estimate=cost,
    )(x2, emb2)


def position_embedding(x, emb_table):
    """x: (B, T, E); emb_table: (seq_len, E) with seq_len >= T.

    Matches `x + emb_table[:T][None]` with JAX dtype promotion (cast done in-kernel).
    """
    B, T, E = x.shape
    S, E2 = emb_table.shape
    assert E2 == E and S >= T

    out_dtype = jnp.promote_types(x.dtype, emb_table.dtype)
    io = jnp.dtype(out_dtype).itemsize
    min_item = min(jnp.dtype(x.dtype).itemsize, jnp.dtype(emb_table.dtype).itemsize, io)
    sub = _sublane_multiple(min_item)
    tile_target, vmem_limit = _budgets()

    if E % 128 == 0:
        # Lane-dense already: tile the sequence axis; when the tile is sublane-aligned,
        # window the *full* table via the BlockSpec index_map (no T x E slice copy).
        tile_rows = _choose_row_tile(T, E, io, sub, tile_target)
        tile_rows = _maybe_split_rows(tile_rows, T, B, E * io, sub)
        emb_in = emb_table if tile_rows % sub == 0 else emb_table[:T]
        return _pos_embed_call_3d(x, emb_in, tile_rows, out_dtype, vmem_limit)

    if (T * E) % 128 == 0:
        # E not lane-aligned (e.g. E=32): repack each batch row into (R, 128) slabs so
        # every output store is an unmasked full-lane vst.
        L = 128
        R = (T * E) // L
        x_p = x.reshape(B, R, L)                 # contiguous reshape (metadata only)
        emb_p = emb_table[:T].reshape(R, L)      # tiny (T*E elements)
        target_rows = max(sub, tile_target // (L * io))

        # Batch folding: when the per-batch slab is far below one tile, fold k whole
        # batches per grid step (small-T / large-B shapes would otherwise pay the
        # ~0.35 us fixed per-step cost B times).
        k = 1
        if B > 1 and R < target_rows:
            k = min(B, max(1, target_rows // R))
            if k < B:
                g = sub // math.gcd(R, sub)      # smallest step keeping k*R sublane-aligned
                k = (k // g) * g
        if k >= 2:
            x_flat = x_p.reshape(B * R, L)
            emb_fold = jnp.tile(emb_p, (k, 1))   # one tile's worth (k*T*E elems), tiny
            out = _pos_embed_call_2d(x_flat, emb_fold, k * R, out_dtype, vmem_limit)
            return out.reshape(B, T, E)

        tile_rows = _choose_row_tile(R, L, io, sub, tile_target)
        tile_rows = _maybe_split_rows(tile_rows, R, B, L * io, sub)
        out = _pos_embed_call_3d(x_p, emb_p, tile_rows, out_dtype, vmem_limit)
        return out.reshape(B, T, E)

    # Ragged fallback: keep (T, E) layout with full-E blocks (masked lane stores, legal).
    # For very large ragged E, padding the lane axis to a 128 multiple would avoid the
    # masked vst penalty; not needed for the shapes this module is used with.
    tile_rows = _choose_row_tile(T, E, io, sub, tile_target)
    tile_rows = _maybe_split_rows(tile_rows, T, B, E * io, sub)
    return _pos_embed_call_3d(x, emb_table[:T], tile_rows, out_dtype, vmem_limit)


if __name__ == "__main__":
    key = jax.random.PRNGKey(0)
    kx, kw, kx2, kw2, kx3, kw3 = jax.random.split(key, 6)

    # 1) Module-consistent small shape: batch=2, seq=8, embedding_dim=32
    #    (E % 128 != 0 -> lane-dense repack + batch-fold path).
    B, T, E = 2, 8, 32
    x = jax.random.normal(kx, (B, T, E), dtype=jnp.float32)
    emb_table = jax.random.normal(kw, (T, E), dtype=jnp.float32)  # nn.Embedding ~ N(0,1)
    out = jax.block_until_ready(position_embedding(x, emb_table))
    ref = x + emb_table[:T][None, :, :]
    assert out.shape == ref.shape and out.dtype == ref.dtype
    assert jnp.allclose(out, ref, atol=1e-6), "mismatch vs reference (repack/fold path)"

    # 2) Lane-aligned path (E % 128 == 0, full table windowed by the index_map).
    B2, T2, E2, S2 = 2, 8, 128, 16
    x2 = jax.random.normal(kx2, (B2, T2, E2), dtype=jnp.float32)
    emb_table2 = jax.random.normal(kw2, (S2, E2), dtype=jnp.float32)
    out2 = jax.block_until_ready(position_embedding(x2, emb_table2))
    ref2 = x2 + emb_table2[:T2][None, :, :]
    assert out2.shape == ref2.shape
    assert jnp.allclose(out2, ref2, atol=1e-6), "mismatch vs reference (windowed-table path)"

    # 3) Mixed-dtype promotion handled inside the kernel (bf16 x + f32 table -> f32),
    #    no wrapper astype pass over x.
    B3, T3, E3 = 2, 16, 128
    x3 = jax.random.normal(kx3, (B3, T3, E3), dtype=jnp.bfloat16)
    emb_table3 = jax.random.normal(kw3, (T3, E3), dtype=jnp.float32)
    out3 = jax.block_until_ready(position_embedding(x3, emb_table3))
    ref3 = x3 + emb_table3[:T3][None, :, :]
    assert out3.dtype == ref3.dtype == jnp.float32
    assert jnp.allclose(out3, ref3, atol=1e-6), "mismatch vs reference (mixed-dtype path)"

    print("KERNEL_OK")
</pallas_src>

<mosaic_0001>
module attributes {stable_mosaic.version = 11 : i64} {
  func.func @_pos_embed_kernel(%arg0: i32, %arg1: memref<4x128xf32, #tpu.memory_space<vmem>>, %arg2: memref<4x128xf32, #tpu.memory_space<vmem>>, %arg3: memref<4x128xf32, #tpu.memory_space<vmem>>) attributes {dimension_semantics = [#tpu.dimension_semantics<parallel>], iteration_bounds = array<i64: 1>, scalar_prefetch = 0 : i64, scratch_operands = 0 : i64, tpu.core_type = #tpu.core_type<tc>, window_params = [{transform_indices = @transform_0, window_bounds = array<i64: 4, 128>}, {pipeline_mode = #tpu.pipeline_mode<synchronous>, transform_indices = @transform_1, window_bounds = array<i64: 4, 128>}, {transform_indices = @transform_2, window_bounds = array<i64: 4, 128>}]} {
    %c0 = arith.constant 0 : index
    %c0_0 = arith.constant 0 : index
    %0 = vector.load %arg1[%c0, %c0_0] : memref<4x128xf32, #tpu.memory_space<vmem>>, vector<4x128xf32>
    %c0_1 = arith.constant 0 : index
    %c0_2 = arith.constant 0 : index
    %1 = vector.load %arg2[%c0_1, %c0_2] : memref<4x128xf32, #tpu.memory_space<vmem>>, vector<4x128xf32>
    %2 = arith.addf %0, %1 : vector<4x128xf32>
    %c0_3 = arith.constant 0 : index
    %c0_4 = arith.constant 0 : index
    %3 = vector.load %arg3[%c0_3, %c0_4] : memref<4x128xf32, #tpu.memory_space<vmem>>, vector<4x128xf32>
    tpu.vector_store %arg3[%c0_3, %c0_4], %2 {strides = array<i32>} : memref<4x128xf32, #tpu.memory_space<vmem>>, vector<4x128xf32>,
    return
  }
  func.func @transform_0(%arg0: i32) -> (i32, i32) {
    %c0_i32 = arith.constant 0 : i32
    %c0_i32_0 = arith.constant 0 : i32
    return %arg0, %c0_i32 : i32, i32
  }
  func.func @transform_1(%arg0: i32) -> (i32, i32) {
    %c0_i32 = arith.constant 0 : i32
    %c0_i32_0 = arith.constant 0 : i32
    %c0_i32_1 = arith.constant 0 : i32
    return %c0_i32, %c0_i32_0 : i32, i32
  }
  func.func @transform_2(%arg0: i32) -> (i32, i32) {
    %c0_i32 = arith.constant 0 : i32
    %c0_i32_0 = arith.constant 0 : i32
    return %arg0, %c0_i32 : i32, i32
  }
}

</mosaic_0001>

<llo_original>
// kernel: tpu_custom_call.1
$region0: #{tpu_custom_call.1}
  #allocation0 [shape = 'u32[]', space=smem, size = 0x4, offset = 0x4, fixed_abs, tag = 'smem constant byte address 0x4 - core index']
  #allocation1 [shape = 'u32[144,128]{1,0:T(1,128)}', space=vmem, size = 0x12000, scoped, tag = 'internal scratch']
  %s0 = inlined_call_operand.hbm [shape: f32[4,128], index: 0, kind: input, shape index: {}]
  %s1 = inlined_call_operand.hbm [shape: f32[4,128], index: 1, kind: input, shape index: {}]
  %s2 = inlined_call_operand.hbm [shape: f32[4,128], index: 2, kind: output, shape index: {}]
  %s3 = sld [smem:[#allocation0]]
  $region26: #{tpu_custom_call.1} parent=0
    _
  %s5 = ssub.s32 1, %s3
  %s6 = scalar_select 0, %s5, %s3
  $region1: #{tpu_custom_call.1} parent=0
    #allocation2 [shape = 'u8[2048]{0}', space=vmem, size = 0x800, scoped, tag = 'input window, operand 0, single buffered']
    #allocation3 [shape = 's32[1]{0}', space=sflag, size = 0x4, scoped, tag = 'scoped memory for tpu_custom_call.1']
    #allocation4 [shape = 's32[1]{0}', space=sflag, size = 0x4, scoped, tag = 'scoped memory for tpu_custom_call.1']
    #allocation5 [shape = 'u8[2048]{0}', space=vmem, size = 0x800, scoped, tag = 'input window, operand 1, single buffered']
    #allocation6 [shape = 's32[1]{0}', space=sflag, size = 0x4, scoped, tag = 'scoped memory for tpu_custom_call.1']
    #allocation7 [shape = 'u8[2048]{0}', space=vmem, size = 0x800, scoped, tag = 'output window, operand 0, single buffered']
    %7 = vsyncpa [#allocation3], 0
    %8 = vsyncpa [#allocation6], 0
    %9 = vsyncpa [#allocation4], 0
    // Predicated region
    $region2: #{tpu_custom_call.1} parent=1 // pred_check
      _
    $region3: #{tpu_custom_call.1} parent=1 // pred_check_branch
      %11 = sbr.rel (0) target = $region5
    $region4: #{tpu_custom_call.1} parent=1 // pred_region
      %s13 = ssub.s32 64, 64
      %14 = vsyncadd [#allocation3], %s13
      %s16 = sshll.u32 [#allocation2], 4
      %s17 = int_to_ptr.vmem [resolvable:$true] %s16
      %19 = dma.hbm_to_vmem [thread:$0]  %s0, 64, %s17, [#allocation3]
    $region5: #{tpu_custom_call.1} parent=1 // pred_fallthru
      _
    // Predicated region
    $region6: #{tpu_custom_call.1} parent=1 // pred_check
      _
    $region7: #{tpu_custom_call.1} parent=1 // pred_check_branch
      %21 = sbr.rel (0) target = $region9
    $region8: #{tpu_custom_call.1} parent=1 // pred_region
      %s23 = ssub.s32 64, 64
      %24 = vsyncadd [#allocation6], %s23
      %s26 = sshll.u32 [#allocation5], 4
      %s27 = int_to_ptr.vmem [resolvable:$true] %s26
      %29 = dma.hbm_to_vmem [thread:$0]  %s1, 64, %s27, [#allocation6]
    $region9: #{tpu_custom_call.1} parent=1 // pred_fallthru
      _
    // Predicated region
    $region10: #{tpu_custom_call.1} parent=1 // pred_check
      _
    $region11: #{tpu_custom_call.1} parent=1 // pred_check_branch
      %31 = sbr.rel (0) target = $region13
    $region12: #{tpu_custom_call.1} parent=1 // pred_region
      %32 = dma.done [#allocation3], 64
    $region13: #{tpu_custom_call.1} parent=1 // pred_fallthru
      _
    // Predicated region
    $region14: #{tpu_custom_call.1} parent=1 // pred_check
      _
    $region15: #{tpu_custom_call.1} parent=1 // pred_check_branch
      %34 = sbr.rel (0) target = $region17
    $region16: #{tpu_custom_call.1} parent=1 // pred_region
      %35 = dma.done [#allocation6], 64
    $region17: #{tpu_custom_call.1} parent=1 // pred_fallthru
      _
    %v36 = vld [vmem:[#allocation2] sm:$0xf]
    %v37 = vld [vmem:[#allocation5] sm:$0xf]
    %v38 = vadd.f32 %v36, %v37
    %39 = vst [vmem:[#allocation7] sm:$0xf] %v38
    // Predicated region
    $region18: #{tpu_custom_call.1} parent=1 // pred_check
      _
    $region19: #{tpu_custom_call.1} parent=1 // pred_check_branch
      %41 = sbr.rel (0) target = $region21
    $region20: #{tpu_custom_call.1} parent=1 // pred_region
      %s43 = ssub.s32 64, 64
      %44 = vsyncadd [#allocation4], %s43
      %s46 = sshll.u32 [#allocation7], 4
      %s47 = int_to_ptr.vmem [resolvable:$true] %s46
      %49 = dma.vmem_to_hbm [thread:$0]  %s47, 64, %s2, [#allocation4]
    $region21: #{tpu_custom_call.1} parent=1 // pred_fallthru
      _
    // Predicated region
    $region22: #{tpu_custom_call.1} parent=1 // pred_check
      _
    $region23: #{tpu_custom_call.1} parent=1 // pred_check_branch
      %51 = sbr.rel (0) target = $region25
    $region24: #{tpu_custom_call.1} parent=1 // pred_region
      %52 = dma.done [#allocation4], 64
    $region25: #{tpu_custom_call.1} parent=1 // pred_fallthru
      _
    %53 = vsyncpa [#allocation3], 1
    %54 = vsyncpa [#allocation6], 1
    %55 = vsyncpa [#allocation4], 1

</llo_original>
